<compile_context>
chip_gen: v7x
topology: tpu7x:2x2x1
jax: 0.10.0
libtpu: 0.0.40
codegen_flags: <defaults>
</compile_context>

<pallas_src>
import functools

import jax
import jax.numpy as jnp
from jax.experimental import pallas as pl
from jax.experimental.pallas import tpu as pltpu


def _vmem_capacity_bytes():
    try:
        info = pltpu.get_tpu_info()
        cap = getattr(info, "vmem_capacity_bytes", None)
        if cap:
            return int(cap)
    except Exception:
        pass
    return 64 * 1024 * 1024  # conservative fallback, safe on every generation


def _hloss_kernel(x_ref, o_ref, *, seq_len, tile_s, slab, reduction_sum, use_mxu):
    s = pl.program_id(1)
    n_s = pl.num_programs(1)
    bb = o_ref.shape[0]
    v = x_ref.shape[-1]

    @pl.when(s == 0)
    def _init():
        o_ref[...] = jnp.zeros_like(o_ref)

    if use_mxu:
        # Hoisted out of the slab loop (JAX does not CSE broadcast_in_dim).
        ones_v = jnp.ones((v, 128), dtype=jnp.float32)

    def slab_entropy(start, size, masked):
        """Entropy sum over `size` rows of the block starting at row `start`."""
        xs = x_ref[:, pl.ds(start, size), :].astype(jnp.float32)   # (bb, size, V)
        if masked:
            row = jax.lax.broadcasted_iota(jnp.int32, (1, size, 1), 1)
            valid = (s * tile_s + start + row) < seq_len
            # Mask x *before* exp so padding rows never produce Inf/NaN.
            xs = jnp.where(valid, xs, 0.0)
        m = jnp.max(xs, axis=-1, keepdims=True)                    # (bb, size, 1)
        sh = xs - m
        ex = jnp.exp(sh)
        if use_mxu:
            ex2 = ex.reshape(bb * size, v)
            w2 = (ex * sh).reshape(bb * size, v)
            denom = jnp.dot(ex2, ones_v, preferred_element_type=jnp.float32)[:, 0:1]
            num = jnp.dot(w2, ones_v, preferred_element_type=jnp.float32)[:, 0:1]
            denom = denom.reshape(bb, size, 1)
            num = num.reshape(bb, size, 1)
        else:
            denom = jnp.sum(ex, axis=-1, keepdims=True)            # (bb, size, 1)
            num = jnp.sum(ex * sh, axis=-1, keepdims=True)         # (bb, size, 1)
        # entropy = logsumexp - E_p[x - max] = log(denom) - num / denom (exact div)
        ent = jnp.log(denom) - num / denom                         # (bb, size, 1)
        if masked:
            ent = jnp.where(valid, ent, 0.0)
        return jnp.sum(ent, axis=1, keepdims=True)                 # (bb, 1, 1)

    def accumulate(masked):
        n_full = tile_s // slab
        rem = tile_s - n_full * slab
        total = jnp.zeros((bb, 1, 1), jnp.float32)
        if n_full > 0:
            def body(i, carry):
                start = i * slab
                if slab % 8 == 0:
                    start = pl.multiple_of(start, 8)
                return carry + slab_entropy(start, slab, masked)
            total = jax.lax.fori_loop(0, n_full, body, total,
                                      unroll=min(n_full, 4))
        if rem > 0:
            total = total + slab_entropy(n_full * slab, rem, masked)
        o_ref[...] += total

    if seq_len % tile_s != 0:
        # Only the last grid step needs masking; keep it off the hot path.
        @pl.when(s != n_s - 1)
        def _full_steps():
            accumulate(masked=False)

        @pl.when(s == n_s - 1)
        def _partial_step():
            accumulate(masked=True)
    else:
        accumulate(masked=False)

    if not reduction_sum:
        @pl.when(s == n_s - 1)
        def _finalize():
            o_ref[...] = o_ref[...] * (1.0 / seq_len)


def _choose_tiles(B, S, V, itemsize, per_buffer_bytes):
    """Pick (Bb, TILE_S): largest block within budget, >= 2 batch blocks."""
    row_bytes = max(1, V * itemsize)
    max_rows = max(8, per_buffer_bytes // row_bytes)

    if S <= max_rows:
        # Whole sequence in one block; pack batch elements per step, but keep
        # at least 2 batch blocks so both v7x TensorCores get work.
        max_bb = max(1, max_rows // max(S, 1))
        if B >= 2:
            max_bb = min(max_bb, B // 2)
        bb = 1
        for cand in range(1, min(B, max_bb) + 1):   # largest divisor of B
            if B % cand == 0:
                bb = cand
        return bb, S

    # Tile S: largest multiple-of-8 tile that fits; only prefer an exact
    # divisor of S if it keeps >= 75% of that size (the in-kernel mask
    # handles a partial last tile otherwise).
    tile_s = max(8, min(S, (max_rows // 8) * 8))
    lo = max(8, (tile_s * 3) // 4)
    for cand in range(tile_s, lo - 1, -8):
        if S % cand == 0:
            return 1, cand
    return 1, tile_s


def _choose_slab(bb, tile_s, V, target_bytes=1024 * 1024):
    """Rows per in-kernel compute slab: each f32 intermediate ~<= 1 MiB."""
    rows = max(8, min(32, target_bytes // max(1, bb * V * 4)))
    rows = max(8, (rows // 8) * 8)
    return min(rows, tile_s)


def hloss(x: jax.Array, reduction: str = "mean", *, tile_s=None, block_b=None,
          use_mxu_reduce: bool = False) -> jax.Array:
    """Entropy loss over the last axis of x (B, S, V) -> (B,)."""
    assert x.ndim == 3, "this wrapper expects (B, S, V)"
    B, S, V = x.shape
    itemsize = jnp.dtype(x.dtype).itemsize

    cap = _vmem_capacity_bytes()
    # ~cap/6 per (double-buffered) input buffer, capped at 24 MiB:
    # ~10 MiB on v7x (64 MiB VMEM), ~21 MiB on v5e/v6e (128 MiB VMEM).
    per_buffer = min(max(8 * 1024 * 1024, cap // 6), 24 * 1024 * 1024)

    if tile_s is None and block_b is None:
        bb, ts = _choose_tiles(B, S, V, itemsize, per_buffer)
    else:
        ts = min(S, tile_s) if tile_s is not None else S
        bb = block_b if block_b is not None else 1
    assert B % bb == 0, "batch block size must divide B"
    assert ts == S or ts % 8 == 0, "S tile must be a multiple of 8 or the full S"

    slab = _choose_slab(bb, ts, V)

    n_b = B // bb
    n_s = pl.cdiv(S, ts)

    block_bytes = bb * ts * V * itemsize
    slab_bytes = bb * slab * V * 4
    vmem_limit = 2 * block_bytes + 8 * slab_bytes + 2 * 1024 * 1024
    if use_mxu_reduce:
        vmem_limit += V * 128 * 4
    vmem_limit = max(vmem_limit, 32 * 1024 * 1024)
    vmem_limit = min(vmem_limit, (cap * 3) // 4)

    kernel = functools.partial(
        _hloss_kernel, seq_len=S, tile_s=ts, slab=slab,
        reduction_sum=(reduction == "sum"), use_mxu=use_mxu_reduce)

    # Output is (B, 1, 1) so the batch dim stays out of the tiled trailing
    # (sublane, lane) dims; each (bb, 1, 1) block is VMEM-resident across the
    # S (reduction) grid axis and doubles as the accumulator.
    out = pl.pallas_call(
        kernel,
        out_shape=jax.ShapeDtypeStruct((B, 1, 1), jnp.float32),
        grid_spec=pltpu.PrefetchScalarGridSpec(
            num_scalar_prefetch=0,
            grid=(n_b, n_s),                       # reduction (S) axis last
            in_specs=[pl.BlockSpec((bb, ts, V), lambda b, s: (b, s, 0))],
            out_specs=pl.BlockSpec((bb, 1, 1), lambda b, s: (b, 0, 0)),
        ),
        compiler_params=pltpu.CompilerParams(
            dimension_semantics=("parallel", "arbitrary"),
            vmem_limit_bytes=int(vmem_limit),
        ),
    )(x)
    # mimics torch's .squeeze(-1): (B, 1, 1) -> (B,)
    return out[:, 0, 0]


def _hloss_ref(x, reduction="mean"):
    # Pure-JAX reference for correctness checking.
    logp = jax.nn.log_softmax(x.astype(jnp.float32), axis=-1)
    p = jnp.exp(logp)
    ent = jnp.sum(-p * logp, axis=-1, keepdims=True)         # (B, S, 1)
    if reduction == "sum":
        red = jnp.sum(ent, axis=-2)
    else:
        red = jnp.mean(ent, axis=-2)
    return jnp.squeeze(red, axis=-1)


if __name__ == "__main__":
    key = jax.random.PRNGKey(0)
    k1, k2, k3, k4 = jax.random.split(key, 4)

    # Case 1: canonical small shape; auto chooser keeps 2 batch blocks.
    B, S, V = 2, 8, 32
    x = jax.random.normal(k1, (B, S, V), dtype=jnp.float32)
    out = jax.block_until_ready(hloss(x, reduction="mean"))
    ref = _hloss_ref(x, reduction="mean")
    assert out.shape == (B,)
    assert jnp.allclose(out, ref, atol=1e-3, rtol=1e-3), (out, ref)

    # Case 2: explicit S tiling with a partial (masked) last tile + 'sum'.
    B2, S2, V2 = 2, 20, 128
    x2 = jax.random.normal(k2, (B2, S2, V2), dtype=jnp.float32)
    out2 = jax.block_until_ready(hloss(x2, reduction="sum", tile_s=8, block_b=2))
    ref2 = _hloss_ref(x2, reduction="sum")
    assert out2.shape == (B2,)
    assert jnp.allclose(out2, ref2, atol=1e-3, rtol=1e-3), (out2, ref2)

    # Case 3: bf16 input (halved HBM traffic), f32 math inside the kernel.
    B3, S3, V3 = 4, 16, 256
    x3 = jax.random.normal(k3, (B3, S3, V3), dtype=jnp.float32).astype(jnp.bfloat16)
    out3 = jax.block_until_ready(hloss(x3, reduction="mean"))
    ref3 = _hloss_ref(x3.astype(jnp.float32), reduction="mean")
    assert out3.shape == (B3,)
    assert jnp.allclose(out3, ref3, atol=1e-2, rtol=1e-2), (out3, ref3)

    # Case 4: optional MXU offload of the V-axis sums (multi-slab fori path).
    B4, S4, V4 = 2, 64, 512
    x4 = jax.random.normal(k4, (B4, S4, V4), dtype=jnp.float32).astype(jnp.bfloat16)
    out4 = jax.block_until_ready(hloss(x4, reduction="mean", use_mxu_reduce=True))
    ref4 = _hloss_ref(x4.astype(jnp.float32), reduction="mean")
    assert out4.shape == (B4,)
    assert jnp.allclose(out4, ref4, atol=1e-2, rtol=1e-2), (out4, ref4)

    print("KERNEL_OK")
</pallas_src>

<mosaic_0001>
module attributes {stable_mosaic.version = 11 : i64} {
  func.func @_hloss_kernel(%arg0: i32, %arg1: i32, %arg2: memref<1x8x32xf32, #tpu.memory_space<vmem>>, %arg3: memref<1x1x1xf32, #tpu.memory_space<vmem>>) attributes {dimension_semantics = [#tpu.dimension_semantics<parallel>, #tpu.dimension_semantics<arbitrary>], iteration_bounds = array<i64: 2, 1>, scalar_prefetch = 0 : i64, scratch_operands = 0 : i64, tpu.core_type = #tpu.core_type<tc>, window_params = [{transform_indices = @transform_0, window_bounds = array<i64: 1, 8, 32>}, {transform_indices = @transform_1, window_bounds = array<i64: 1, 1, 1>}]} {
    %c0_i32 = arith.constant 0 : i32
    %0 = arith.cmpi eq, %arg1, %c0_i32 : i32
    %1 = arith.extui %0 : i1 to i32
    %c0_i32_0 = arith.constant 0 : i32
    %2 = arith.cmpi ne, %1, %c0_i32_0 : i32
    scf.if %2 {
      %cst_15 = arith.constant 0.000000e+00 : f32
      %30 = vector.broadcast %cst_15 : f32 to vector<1x1x1xf32>
      %c0_16 = arith.constant 0 : index
      %c0_17 = arith.constant 0 : index
      %c0_18 = arith.constant 0 : index
      %31 = vector.load %arg3[%c0_16, %c0_17, %c0_18] : memref<1x1x1xf32, #tpu.memory_space<vmem>>, vector<1x1x1xf32>
      tpu.vector_store %arg3[%c0_16, %c0_17, %c0_18], %30 {strides = array<i32>} : memref<1x1x1xf32, #tpu.memory_space<vmem>>, vector<1x1x1xf32>,
    } else {
    }
    %cst = arith.constant 0.000000e+00 : f32
    %3 = vector.broadcast %cst : f32 to vector<1x1x1xf32>
    %c0_i32_1 = arith.constant 0 : i32
    %c8_i32 = arith.constant 8 : i32
    %4 = arith.muli %c0_i32_1, %c8_i32 : i32
    %5 = tpu.assume_multiple %4, 8 : i32
    %c0 = arith.constant 0 : index
    %6 = arith.index_cast %5 : i32 to index
    %c0_2 = arith.constant 0 : index
    %7 = vector.load %arg2[%c0, %6, %c0_2] : memref<1x8x32xf32, #tpu.memory_space<vmem>>, vector<1x8x32xf32>
    %cst_3 = arith.constant dense<0xFF800000> : vector<1x8xf32>
    %8 = vector.multi_reduction <maximumf>, %7, %cst_3 [2] : vector<1x8x32xf32> to vector<1x8xf32>
    %9 = vector.shape_cast %8 : vector<1x8xf32> to vector<1x8x1xf32>
    %10 = vector.broadcast %9 : vector<1x8x1xf32> to vector<1x8x32xf32>
    %11 = arith.subf %7, %10 : vector<1x8x32xf32>
    %12 = math.exp %11 : vector<1x8x32xf32>
    %cst_4 = arith.constant dense<0.000000e+00> : vector<1x8xf32>
    %13 = vector.multi_reduction <add>, %12, %cst_4 [2] : vector<1x8x32xf32> to vector<1x8xf32>
    %14 = vector.shape_cast %13 : vector<1x8xf32> to vector<1x8x1xf32>
    %15 = arith.mulf %12, %11 : vector<1x8x32xf32>
    %cst_5 = arith.constant dense<0.000000e+00> : vector<1x8xf32>
    %16 = vector.multi_reduction <add>, %15, %cst_5 [2] : vector<1x8x32xf32> to vector<1x8xf32>
    %17 = vector.shape_cast %16 : vector<1x8xf32> to vector<1x8x1xf32>
    %18 = math.log %14 : vector<1x8x1xf32>
    %19 = arith.divf %17, %14 : vector<1x8x1xf32>
    %20 = arith.subf %18, %19 : vector<1x8x1xf32>
    %cst_6 = arith.constant dense<0.000000e+00> : vector<1x1xf32>
    %21 = vector.multi_reduction <add>, %20, %cst_6 [1] : vector<1x8x1xf32> to vector<1x1xf32>
    %22 = vector.shape_cast %21 : vector<1x1xf32> to vector<1x1x1xf32>
    %23 = arith.addf %3, %22 : vector<1x1x1xf32>
    %c1_i32 = arith.constant 1 : i32
    %c0_7 = arith.constant 0 : index
    %c0_8 = arith.constant 0 : index
    %c0_9 = arith.constant 0 : index
    %24 = vector.load %arg3[%c0_7, %c0_8, %c0_9] : memref<1x1x1xf32, #tpu.memory_space<vmem>>, vector<1x1x1xf32>
    %25 = arith.addf %24, %23 : vector<1x1x1xf32>
    %c0_10 = arith.constant 0 : index
    %c0_11 = arith.constant 0 : index
    %c0_12 = arith.constant 0 : index
    %26 = vector.load %arg3[%c0_10, %c0_11, %c0_12] : memref<1x1x1xf32, #tpu.memory_space<vmem>>, vector<1x1x1xf32>
    tpu.vector_store %arg3[%c0_10, %c0_11, %c0_12], %25 {strides = array<i32>} : memref<1x1x1xf32, #tpu.memory_space<vmem>>, vector<1x1x1xf32>,
    %c0_i32_13 = arith.constant 0 : i32
    %27 = arith.cmpi eq, %arg1, %c0_i32_13 : i32
    %28 = arith.extui %27 : i1 to i32
    %c0_i32_14 = arith.constant 0 : i32
    %29 = arith.cmpi ne, %28, %c0_i32_14 : i32
    scf.if %29 {
      %c0_15 = arith.constant 0 : index
      %c0_16 = arith.constant 0 : index
      %c0_17 = arith.constant 0 : index
      %30 = vector.load %arg3[%c0_15, %c0_16, %c0_17] : memref<1x1x1xf32, #tpu.memory_space<vmem>>, vector<1x1x1xf32>
      %cst_18 = arith.constant 1.250000e-01 : f32
      %31 = vector.broadcast %cst_18 : f32 to vector<1x1x1xf32>
      %32 = arith.mulf %30, %31 : vector<1x1x1xf32>
      %c0_19 = arith.constant 0 : index
      %c0_20 = arith.constant 0 : index
      %c0_21 = arith.constant 0 : index
      %33 = vector.load %arg3[%c0_19, %c0_20, %c0_21] : memref<1x1x1xf32, #tpu.memory_space<vmem>>, vector<1x1x1xf32>
      tpu.vector_store %arg3[%c0_19, %c0_20, %c0_21], %32 {strides = array<i32>} : memref<1x1x1xf32, #tpu.memory_space<vmem>>, vector<1x1x1xf32>,
    } else {
    }
    return
  }
  func.func @transform_0(%arg0: i32, %arg1: i32) -> (i32, i32, i32) {
    %c0_i32 = arith.constant 0 : i32
    %c0_i32_0 = arith.constant 0 : i32
    return %arg0, %arg1, %c0_i32 : i32, i32, i32
  }
  func.func @transform_1(%arg0: i32, %arg1: i32) -> (i32, i32, i32) {
    %c0_i32 = arith.constant 0 : i32
    %c0_i32_0 = arith.constant 0 : i32
    %c0_i32_1 = arith.constant 0 : i32
    return %arg0, %c0_i32, %c0_i32_0 : i32, i32, i32
  }
}

</mosaic_0001>

<llo_original>
// kernel: tpu_custom_call.1
$region0: #{tpu_custom_call.1}
  #allocation0 [shape = 'u32[]', space=smem, size = 0x4, offset = 0x4, fixed_abs, tag = 'smem constant byte address 0x4 - core index']
  #allocation1 [shape = 'u32[144,128]{1,0:T(1,128)}', space=vmem, size = 0x12000, scoped, tag = 'internal scratch']
  %s0 = inlined_call_operand.hbm [shape: f32[2,8,32], index: 0, kind: input, shape index: {}]
  %s1 = inlined_call_operand.vmem [shape: f32[2,1,1], index: 1, kind: output, shape index: {}]
  %s2 = sld [smem:[#allocation0]]
  $region49: #{tpu_custom_call.1} parent=0
    _
  %s4 = ssub.s32 1, %s2
  %s5 = scalar_select 0, %s4, %s2
  $region1: #{tpu_custom_call.1} parent=0
    #allocation2 [shape = 'u8[8192]{0}', space=vmem, size = 0x2000, scoped, tag = 'input window, operand 0']
    #allocation3 [shape = 's32[2]{0}', space=sflag, size = 0x8, scoped, tag = 'scoped memory for tpu_custom_call.1']
    %6 = vsyncpa [#allocation3], 0
    %s7 = scalar_lea.sflag [#allocation3], 1
    %8 = vsyncpa %s7, 0
    loop: start=0, step=1, limit=4
    $region2: #{tpu_custom_call.1} parent=1 // loop_pre_header
      _
    $region3: #{tpu_custom_call.1} parent=1 // loop_header
      %s10 = sphi 0, %s14
      %p11 = scmp.ge.s32.totalorder %s10, 4
      %s17 = sphi 0, %s29
      %s18 = sphi 0, %s25
      %s19 = sphi 0, %s17
      %s20 = sphi 0, %s18
      %s21 = sphi 0, %s19
      %s22 = sphi 0, %s20
      %s34 = sphi 0, %s36
      %s37 = sphi 0, %s34
      %s38 = sphi 0, %s37
      %s54 = sphi 0, %s38
      %s60 = sphi 0, %s62
      %s63 = sphi 0, %s60
      %s64 = sphi 0, %s63
      %s80 = sphi 0, %s64
    $region4: #{tpu_custom_call.1} parent=1 // loop_header_branch
      %13 = sbr.rel (%p11) target = $region8
    $region5: #{tpu_custom_call.1} parent=1 // loop_body
      %s15 = ssub.s32 %s10, 1
      %s16 = ssub.s32 %s10, 2
      %s23 = sadd.s32 1, %s18
      %p24 = scmp.ge.s32.totalorder %s23, 1
      %s25 = scalar_select %p24, 0, %s23
      %s26 = sadd.s32 1, %s17
      %s27 = scalar_select %p24, %s26, %s17
      %p28 = scmp.ge.s32.totalorder %s27, 2
      %s29 = scalar_select %p28, 0, %s27
      %s30 = ssub.s32 %s17, %s29
      %s31 = ssub.s32 %s18, %s25
      %s32 = sor.u32 %s30, %s31
      %p33 = scmp.eq.s32.totalorder %s32, 0
      %s35 = sadd.s32 %s34, 1
      %s36 = scalar_select %p33, %s34, %s35
      %p39 = pneg %p33
      %p40 = scmp.eq.s32.totalorder %s10, 1
      %p41 = por %p39, %p40
      %p42 = scmp.ne.s32.totalorder %s34, %s37
      %p43 = scmp.eq.s32.totalorder %s10, 0
      %p44 = por %p42, %p43
      %p45 = scmp.ne.s32.totalorder %s34, %s37
      %p46 = scmp.eq.s32.totalorder %s15, 1
      %p47 = por %p45, %p46
      %p48 = scmp.ne.s32.totalorder %s37, %s38
      %p49 = scmp.eq.s32.totalorder %s15, 0
      %p50 = por %p48, %p49
      %p51 = scmp.ne.s32.totalorder %s37, %s38
      %p52 = scmp.eq.s32.totalorder %s16, 1
      %p53 = por %p51, %p52
      %p55 = scmp.ne.s32.totalorder %s38, %s54
      %p56 = scmp.eq.s32.totalorder %s16, 0
      %p57 = por %p55, %p56
      %s58 = ssub.s32 %s17, %s29
      %p59 = scmp.eq.s32.totalorder %s58, 0
      %s61 = sadd.s32 %s60, 1
      %s62 = scalar_select %p59, %s60, %s61
      %p65 = pneg %p59
      %p66 = scmp.eq.s32.totalorder %s10, 1
      %p67 = por %p65, %p66
      %p68 = scmp.ne.s32.totalorder %s60, %s63
      %p69 = scmp.eq.s32.totalorder %s10, 0
      %p70 = por %p68, %p69
      %p71 = scmp.ne.s32.totalorder %s60, %s63
      %p72 = scmp.eq.s32.totalorder %s15, 1
      %p73 = por %p71, %p72
      %p74 = scmp.ne.s32.totalorder %s63, %s64
      %p75 = scmp.eq.s32.totalorder %s15, 0
      %p76 = por %p74, %p75
      %p77 = scmp.ne.s32.totalorder %s63, %s64
      %p78 = scmp.eq.s32.totalorder %s16, 1
      %p79 = por %p77, %p78
      %p81 = scmp.ne.s32.totalorder %s64, %s80
      %p82 = scmp.eq.s32.totalorder %s16, 0
      %p83 = por %p81, %p82
      %p84 = scmp.le.s32.totalorder 1, %s10
      %p85 = scmp.lt.s32.totalorder %s10, 3
      %p86 = pnand %p84, %p85
      %p87 = pneg %p86
      // Predicated region
      $region9: #{tpu_custom_call.1} parent=5 // pred_check
        _
      $region10: #{tpu_custom_call.1} parent=5 // pred_check_branch
        %89 = sbr.rel (%p86) target = $region12
      $region11: #{tpu_custom_call.1} parent=5 // pred_region
        %s90 = ssub.s32 %s10, 1
      $region12: #{tpu_custom_call.1} parent=5 // pred_fallthru
        _
      %p91 = scmp.lt.s32.totalorder %s10, 2
      // Predicated region
      $region13: #{tpu_custom_call.1} parent=5 // pred_check
        %p92 = pneg %p91
      $region14: #{tpu_custom_call.1} parent=5 // pred_check_branch
        %94 = sbr.rel (%p92) target = $region16
      $region15: #{tpu_custom_call.1} parent=5 // pred_region
        // Predicated region
        $region17: #{tpu_custom_call.1} parent=15 // pred_check
          %p95 = pneg %p44
        $region18: #{tpu_custom_call.1} parent=15 // pred_check_branch
          %97 = sbr.rel (%p95) target = $region20
        $region19: #{tpu_custom_call.1} parent=15 // pred_region
          %s98 = sand.u32 %s34, 1
          %s99 = scalar_lea.sflag [#allocation3], %s98
          %s100 = sand.u32 %s34, 1
          %s101 = smul.addr %s100, 8
          %s102 = scalar_lea.vmem [#allocation2], %s101
          %s104 = ssub.s32 128, 128
          %105 = vsyncadd %s99, %s104
          %s106 = sadd.s32 %s18, %s17
          %s107 = smul.addr %s106, 128
          %s108 = scalar_lea.hbm %s0, %s107
          %s110 = sshll.u32 %s102, 4
          %s111 = int_to_ptr.vmem [resolvable:$true] %s110
          %113 = dma.hbm_to_vmem [thread:$0]  %s108, 128, %s111, %s99
        $region20: #{tpu_custom_call.1} parent=15 // pred_fallthru
          _
      $region16: #{tpu_custom_call.1} parent=5 // pred_fallthru
        _
      %p114 = scmp.le.s32.totalorder 1, %s10
      %p115 = scmp.lt.s32.totalorder %s10, 3
      %p116 = pnand %p114, %p115
      %p117 = pneg %p116
      // Predicated region
      $region21: #{tpu_custom_call.1} parent=5 // pred_check
        _
      $region22: #{tpu_custom_call.1} parent=5 // pred_check_branch
        %119 = sbr.rel (%p116) target = $region24
      $region23: #{tpu_custom_call.1} parent=5 // pred_region
        %s120 = ssub.s32 %s10, 1
        %s121 = sand.u32 %s37, 1
        %s122 = scalar_lea.sflag [#allocation3], %s121
        %s123 = sand.u32 %s37, 1
        %s124 = smul.addr %s123, 8
        %s125 = scalar_lea.vmem [#allocation2], %s124
        // Predicated region
        $region25: #{tpu_custom_call.1} parent=23 // pred_check
          %p126 = pneg %p50
        $region26: #{tpu_custom_call.1} parent=23 // pred_check_branch
          %128 = sbr.rel (%p126) target = $region28
        $region27: #{tpu_custom_call.1} parent=23 // pred_region
          %129 = dma.done %s122, 128
        $region28: #{tpu_custom_call.1} parent=23 // pred_fallthru
          _
        %s130 = sand.u32 %s37, 1
        %s131 = scalar_lea.sflag [#allocation3], %s130
        %s132 = sand.u32 %s37, 1
        %s133 = smul.addr %s132, 8
        %s134 = scalar_lea.vmem [#allocation2], %s133
        %p135 = pneg %p50
        %p136 = pneg %p47
        %p137 = pneg %p76
        %p138 = pneg %p73
        %p139 = scmp.lt.s32.totalorder %s19, 1
        %s140 = scalar_select %p139, %s19, 1
        %s141 = scalar_lea.vmem %s1, %s140
        %p142 = scmp.lt.s32.totalorder %s19, 1
        %s143 = scalar_select %p142, %s19, 1
        %s144 = scalar_lea.vmem %s1, %s143
        %p145 = scmp.eq.s32.totalorder %s20, 0
        // Predicated region
        $region29: #{tpu_custom_call.1} parent=23 // pred_check
          %p146 = pneg %p145
        $region30: #{tpu_custom_call.1} parent=23 // pred_check_branch
          %148 = sbr.rel (%p146) target = $region32
        $region31: #{tpu_custom_call.1} parent=23 // pred_region
          %vm149 = vcmask 0
          %150 = vst.msk [vmem:[%s144] sm:$0x1] %vm149, 0.0
        $region32: #{tpu_custom_call.1} parent=23 // pred_fallthru
          _
        %v151 = vld [vmem:[%s125] sm:$0xff]
        %vm152 = vcmask 261120
        %v153 = vsel %vm152, %v151, -inf
        %154 = vmax.xlane.f32.xlu0 %v153
        %v155 = vpop.xlane.xlu0 %154
        %v156 = vsub.f32 %v151, %v155
        %v157 = vmul.f32 %v156, 1.442695
        %v158 = vpow.pop %v157
        %v159 = vsel %vm152, %v158, 0.0
        %160 = vadd.xlane.f32.xlu0 %v159
        %v161 = vpop.xlane.xlu0 %160
        %v162 = vmul.f32 %v158, %v156
        %v163 = vsel %vm152, %v162, 0.0
        %164 = vadd.xlane.f32.xlu0 %v163
        %v165 = vpop.xlane.xlu0 %164
        %v166 = vlog2.pop %v161
        %v167 = vmul.f32 %v166, 0.6931472
        %v168 = vrcp.pop %v161
        %v169 = vmul.f32 %v165, %v168
        %v170 = vsub.f32 %v167, %v169
        %v171 = vrot.slane %v170, 4
        %v172 = vadd.f32 %v170, %v171
        %v173 = vrot.slane %v172, 2
        %v174 = vadd.f32 %v172, %v173
        %v175 = vrot.slane %v174, 1
        %v176 = vadd.f32 %v174, %v175
        %v177 = vadd.f32 %v176, 0.0
        %v178 = vld [vmem:[%s144] sm:$0x1]
        %v179 = vadd.f32 %v178, %v177
        %vm180 = vcmask 0
        %181 = vst.msk [vmem:[%s144] sm:$0x1] %vm180, %v179
        // Predicated region
        $region33: #{tpu_custom_call.1} parent=23 // pred_check
          %p182 = pneg %p145
        $region34: #{tpu_custom_call.1} parent=23 // pred_check_branch
          %184 = sbr.rel (%p182) target = $region36
        $region35: #{tpu_custom_call.1} parent=23 // pred_region
          %v185 = vld [vmem:[%s144] sm:$0x1]
          %v186 = vmul.f32 %v185, 0.125
          %187 = vst.msk [vmem:[%s144] sm:$0x1] %vm180, %v186
        $region36: #{tpu_custom_call.1} parent=23 // pred_fallthru
          _
        %p188 = scmp.lt.s32.totalorder %s19, 1
        %s189 = scalar_select %p188, %s19, 1
        %s190 = scalar_lea.vmem %s1, %s189
        // Predicated region
        $region37: #{tpu_custom_call.1} parent=23 // pred_check
          %p191 = pneg %p73
        $region38: #{tpu_custom_call.1} parent=23 // pred_check_branch
          %193 = sbr.rel (%p191) target = $region40
        $region39: #{tpu_custom_call.1} parent=23 // pred_region
          _
        $region40: #{tpu_custom_call.1} parent=23 // pred_fallthru
          _
      $region24: #{tpu_custom_call.1} parent=5 // pred_fallthru
        _
      %p194 = scmp.le.s32.totalorder 2, %s10
      // Predicated region
      $region41: #{tpu_custom_call.1} parent=5 // pred_check
        %p195 = pneg %p194
      $region42: #{tpu_custom_call.1} parent=5 // pred_check_branch
        %197 = sbr.rel (%p195) target = $region44
      $region43: #{tpu_custom_call.1} parent=5 // pred_region
        %s198 = ssub.s32 %s10, 2
        // Predicated region
        $region45: #{tpu_custom_call.1} parent=43 // pred_check
          %p199 = pneg %p79
        $region46: #{tpu_custom_call.1} parent=43 // pred_check_branch
          %201 = sbr.rel (%p199) target = $region48
        $region47: #{tpu_custom_call.1} parent=43 // pred_region
          %p202 = scmp.lt.s32.totalorder %s21, 1
          %s203 = scalar_select %p202, %s21, 1
          %s204 = scalar_lea.vmem %s1, %s203
        $region48: #{tpu_custom_call.1} parent=43 // pred_fallthru
          _
      $region44: #{tpu_custom_call.1} parent=5 // pred_fallthru
        _
    $region6: #{tpu_custom_call.1} parent=1 // loop_footer
      %s14 = sadd.s32 1, %s10
    $region7: #{tpu_custom_call.1} parent=1 // loop_footer_branch
      %9 = sbr.rel target = $region3
    $region8: #{tpu_custom_call.1} parent=1 // loop_exit
      _
    %205 = vsyncpa [#allocation3], 1
    %s206 = scalar_lea.sflag [#allocation3], 1
    %207 = vsyncpa %s206, 1

</llo_original>
